<compile_context>
chip_gen: v7x
topology: tpu7x:2x2x1
jax: 0.10.0
libtpu: 0.0.40
codegen_flags: <defaults>
</compile_context>

<pallas_src>
from functools import partial

import jax
import jax.numpy as jnp
from jax.experimental import pallas as pl
from jax.experimental.pallas import tpu as pltpu


def conv_tanh_kernel(xp2_ref, w_ref, o_ref, *, Ho, Wo, KH, KW, O):
    # xp2_ref: (2, 2, Hp//2, Wp//2)  phase-split padded input   (VMEM)
    # w_ref:   (O, KH*KW)            flattened conv weights     (SMEM, scalars)
    # o_ref:   (O, Ho, Wo)           tanh(conv) output          (VMEM)
    #
    # tap(kh, kw)[oy, ox] = xp[2*oy + kh, 2*ox + kw]
    #                     = xp2[kh % 2, kw % 2, oy + kh // 2, ox + kw // 2]
    taps = []
    for kh in range(KH):
        qh, ph = divmod(kh, 2)
        for kw in range(KW):
            qw, pw = divmod(kw, 2)
            taps.append(xp2_ref[ph, pw, pl.ds(qh, Ho), pl.ds(qw, Wo)])

    for o in range(O):
        acc = w_ref[o, 0] * taps[0]
        for k in range(1, KH * KW):
            acc = acc + w_ref[o, k] * taps[k]
        o_ref[o] = jnp.tanh(acc).astype(o_ref.dtype)


@jax.jit
def conv2d_tanh(x, w):
    """Conv2d(1, 8, 3, stride=2, padding=1, bias=False) + tanh, NCHW/OIHW."""
    N, C, H, W = x.shape
    O, Ci, KH, KW = w.shape
    assert (N, C, Ci, KH, KW) == (1, 1, 1, 3, 3), (x.shape, w.shape)
    stride, padding = 2, 1
    Ho = (H + 2 * padding - KH) // stride + 1      # 14
    Wo = (W + 2 * padding - KW) // stride + 1      # 14
    Hp, Wp = H + 2 * padding, W + 2 * padding      # 30, 30

    # Pad + phase-split by parity: xp2[py, px, r, c] = xp[2r + py, 2c + px].
    # One tiny fused XLA op on a ~3.6 KB array; replaces the old 9-tap im2col
    # gather whose (K, Mp) result round-tripped through HBM.
    xp = jnp.pad(x[0, 0], ((padding, padding), (padding, padding)))
    xp2 = xp.reshape(Hp // 2, 2, Wp // 2, 2).transpose(1, 3, 0, 2)  # (2,2,15,15)

    # (O, C, KH, KW) -> (O, K); row ordering k = kh*KW + kw matches the taps.
    wm = w.reshape(O, KH * KW)

    itemsize = jnp.dtype(x.dtype).itemsize
    out = pl.pallas_call(
        partial(conv_tanh_kernel, Ho=Ho, Wo=Wo, KH=KH, KW=KW, O=O),
        out_shape=jax.ShapeDtypeStruct((O, Ho, Wo), x.dtype),
        in_specs=[
            pl.BlockSpec(memory_space=pltpu.MemorySpace.VMEM),   # xp2
            pl.BlockSpec(memory_space=pltpu.MemorySpace.SMEM),   # weights
        ],
        out_specs=pl.BlockSpec(memory_space=pltpu.MemorySpace.VMEM),
        cost_estimate=pl.CostEstimate(
            flops=2 * O * KH * KW * Ho * Wo,
            transcendentals=O * Ho * Wo,
            bytes_accessed=(xp2.size + wm.size + O * Ho * Wo) * itemsize,
        ),
    )(xp2, wm)

    # (O, Ho, Wo) -> (1, O, Ho, Wo): metadata-only reshape, no copy.
    return out.reshape(1, O, Ho, Wo)


if __name__ == "__main__":
    key = jax.random.PRNGKey(0)
    kx, kw = jax.random.split(key)

    # Input matching the module: (1, 1, 28, 28), float32
    x1 = jax.random.normal(kx, (1, 1, 28, 28), dtype=jnp.float32)

    # Conv2d(1, 8, 3, stride=2, padding=1, bias=False) weights,
    # deterministic kaiming-uniform-ish init (fan_in = 1*3*3 = 9).
    fan_in = 1 * 3 * 3
    bound = 1.0 / jnp.sqrt(jnp.float32(fan_in))
    w = jax.random.uniform(
        kw, (8, 1, 3, 3), dtype=jnp.float32, minval=-bound, maxval=bound
    )

    y = conv2d_tanh(x1, w)
    y = jax.block_until_ready(y)
    assert y.shape == (1, 8, 14, 14), y.shape

    # Reference check against XLA conv + tanh
    ref = jnp.tanh(
        jax.lax.conv_general_dilated(
            x1, w, window_strides=(2, 2), padding=((1, 1), (1, 1)),
            dimension_numbers=("NCHW", "OIHW", "NCHW"),
        )
    )
    assert jnp.allclose(y, ref, atol=1e-4, rtol=1e-4)

    print("KERNEL_OK")
</pallas_src>

<mosaic_0001>
module attributes {stable_mosaic.version = 11 : i64} {
  func.func @conv_tanh_kernel(%arg0: memref<2x2x15x15xf32, #tpu.memory_space<vmem>>, %arg1: memref<8x9xf32, #tpu.memory_space<smem>>, %arg2: memref<8x14x14xf32, #tpu.memory_space<vmem>>) attributes {dimension_semantics = [], scalar_prefetch = 0 : i64, scratch_operands = 0 : i64, tpu.core_type = #tpu.core_type<tc>} {
    %c0 = arith.constant 0 : index
    %c0_0 = arith.constant 0 : index
    %c0_1 = arith.constant 0 : index
    %c0_2 = arith.constant 0 : index
    %0 = vector.load %arg0[%c0, %c0_0, %c0_1, %c0_2] : memref<2x2x15x15xf32, #tpu.memory_space<vmem>>, vector<1x1x14x14xf32>
    %1 = vector.shape_cast %0 : vector<1x1x14x14xf32> to vector<14x14xf32>
    %c0_3 = arith.constant 0 : index
    %c1 = arith.constant 1 : index
    %c0_4 = arith.constant 0 : index
    %c0_5 = arith.constant 0 : index
    %2 = vector.load %arg0[%c0_3, %c1, %c0_4, %c0_5] : memref<2x2x15x15xf32, #tpu.memory_space<vmem>>, vector<1x1x14x14xf32>
    %3 = vector.shape_cast %2 : vector<1x1x14x14xf32> to vector<14x14xf32>
    %c0_6 = arith.constant 0 : index
    %c0_7 = arith.constant 0 : index
    %c0_8 = arith.constant 0 : index
    %c1_9 = arith.constant 1 : index
    %4 = vector.load %arg0[%c0_6, %c0_7, %c0_8, %c1_9] : memref<2x2x15x15xf32, #tpu.memory_space<vmem>>, vector<1x1x14x14xf32>
    %5 = vector.shape_cast %4 : vector<1x1x14x14xf32> to vector<14x14xf32>
    %c1_10 = arith.constant 1 : index
    %c0_11 = arith.constant 0 : index
    %c0_12 = arith.constant 0 : index
    %c0_13 = arith.constant 0 : index
    %6 = vector.load %arg0[%c1_10, %c0_11, %c0_12, %c0_13] : memref<2x2x15x15xf32, #tpu.memory_space<vmem>>, vector<1x1x14x14xf32>
    %7 = vector.shape_cast %6 : vector<1x1x14x14xf32> to vector<14x14xf32>
    %c1_14 = arith.constant 1 : index
    %c1_15 = arith.constant 1 : index
    %c0_16 = arith.constant 0 : index
    %c0_17 = arith.constant 0 : index
    %8 = vector.load %arg0[%c1_14, %c1_15, %c0_16, %c0_17] : memref<2x2x15x15xf32, #tpu.memory_space<vmem>>, vector<1x1x14x14xf32>
    %9 = vector.shape_cast %8 : vector<1x1x14x14xf32> to vector<14x14xf32>
    %c1_18 = arith.constant 1 : index
    %c0_19 = arith.constant 0 : index
    %c0_20 = arith.constant 0 : index
    %c1_21 = arith.constant 1 : index
    %10 = vector.load %arg0[%c1_18, %c0_19, %c0_20, %c1_21] : memref<2x2x15x15xf32, #tpu.memory_space<vmem>>, vector<1x1x14x14xf32>
    %11 = vector.shape_cast %10 : vector<1x1x14x14xf32> to vector<14x14xf32>
    %c0_22 = arith.constant 0 : index
    %c0_23 = arith.constant 0 : index
    %c1_24 = arith.constant 1 : index
    %c0_25 = arith.constant 0 : index
    %12 = vector.load %arg0[%c0_22, %c0_23, %c1_24, %c0_25] : memref<2x2x15x15xf32, #tpu.memory_space<vmem>>, vector<1x1x14x14xf32>
    %13 = vector.shape_cast %12 : vector<1x1x14x14xf32> to vector<14x14xf32>
    %c0_26 = arith.constant 0 : index
    %c1_27 = arith.constant 1 : index
    %c1_28 = arith.constant 1 : index
    %c0_29 = arith.constant 0 : index
    %14 = vector.load %arg0[%c0_26, %c1_27, %c1_28, %c0_29] : memref<2x2x15x15xf32, #tpu.memory_space<vmem>>, vector<1x1x14x14xf32>
    %15 = vector.shape_cast %14 : vector<1x1x14x14xf32> to vector<14x14xf32>
    %c0_30 = arith.constant 0 : index
    %c0_31 = arith.constant 0 : index
    %c1_32 = arith.constant 1 : index
    %c1_33 = arith.constant 1 : index
    %16 = vector.load %arg0[%c0_30, %c0_31, %c1_32, %c1_33] : memref<2x2x15x15xf32, #tpu.memory_space<vmem>>, vector<1x1x14x14xf32>
    %17 = vector.shape_cast %16 : vector<1x1x14x14xf32> to vector<14x14xf32>
    %c0_34 = arith.constant 0 : index
    %c0_35 = arith.constant 0 : index
    %18 = memref.load %arg1[%c0_34, %c0_35] : memref<8x9xf32, #tpu.memory_space<smem>>
    %19 = vector.broadcast %18 : f32 to vector<14x14xf32>
    %20 = arith.mulf %19, %1 : vector<14x14xf32>
    %c0_36 = arith.constant 0 : index
    %c1_37 = arith.constant 1 : index
    %21 = memref.load %arg1[%c0_36, %c1_37] : memref<8x9xf32, #tpu.memory_space<smem>>
    %22 = vector.broadcast %21 : f32 to vector<14x14xf32>
    %23 = arith.mulf %22, %3 : vector<14x14xf32>
    %24 = arith.addf %20, %23 : vector<14x14xf32>
    %c0_38 = arith.constant 0 : index
    %c2 = arith.constant 2 : index
    %25 = memref.load %arg1[%c0_38, %c2] : memref<8x9xf32, #tpu.memory_space<smem>>
    %26 = vector.broadcast %25 : f32 to vector<14x14xf32>
    %27 = arith.mulf %26, %5 : vector<14x14xf32>
    %28 = arith.addf %24, %27 : vector<14x14xf32>
    %c0_39 = arith.constant 0 : index
    %c3 = arith.constant 3 : index
    %29 = memref.load %arg1[%c0_39, %c3] : memref<8x9xf32, #tpu.memory_space<smem>>
    %30 = vector.broadcast %29 : f32 to vector<14x14xf32>
    %31 = arith.mulf %30, %7 : vector<14x14xf32>
    %32 = arith.addf %28, %31 : vector<14x14xf32>
    %c0_40 = arith.constant 0 : index
    %c4 = arith.constant 4 : index
    %33 = memref.load %arg1[%c0_40, %c4] : memref<8x9xf32, #tpu.memory_space<smem>>
    %34 = vector.broadcast %33 : f32 to vector<14x14xf32>
    %35 = arith.mulf %34, %9 : vector<14x14xf32>
    %36 = arith.addf %32, %35 : vector<14x14xf32>
    %c0_41 = arith.constant 0 : index
    %c5 = arith.constant 5 : index
    %37 = memref.load %arg1[%c0_41, %c5] : memref<8x9xf32, #tpu.memory_space<smem>>
    %38 = vector.broadcast %37 : f32 to vector<14x14xf32>
    %39 = arith.mulf %38, %11 : vector<14x14xf32>
    %40 = arith.addf %36, %39 : vector<14x14xf32>
    %c0_42 = arith.constant 0 : index
    %c6 = arith.constant 6 : index
    %41 = memref.load %arg1[%c0_42, %c6] : memref<8x9xf32, #tpu.memory_space<smem>>
    %42 = vector.broadcast %41 : f32 to vector<14x14xf32>
    %43 = arith.mulf %42, %13 : vector<14x14xf32>
    %44 = arith.addf %40, %43 : vector<14x14xf32>
    %c0_43 = arith.constant 0 : index
    %c7 = arith.constant 7 : index
    %45 = memref.load %arg1[%c0_43, %c7] : memref<8x9xf32, #tpu.memory_space<smem>>
    %46 = vector.broadcast %45 : f32 to vector<14x14xf32>
    %47 = arith.mulf %46, %15 : vector<14x14xf32>
    %48 = arith.addf %44, %47 : vector<14x14xf32>
    %c0_44 = arith.constant 0 : index
    %c8 = arith.constant 8 : index
    %49 = memref.load %arg1[%c0_44, %c8] : memref<8x9xf32, #tpu.memory_space<smem>>
    %50 = vector.broadcast %49 : f32 to vector<14x14xf32>
    %51 = arith.mulf %50, %17 : vector<14x14xf32>
    %52 = arith.addf %48, %51 : vector<14x14xf32>
    %53 = math.tanh %52 : vector<14x14xf32>
    %c0_45 = arith.constant 0 : index
    %c0_46 = arith.constant 0 : index
    %c0_47 = arith.constant 0 : index
    %54 = vector.load %arg2[%c0_45, %c0_46, %c0_47] : memref<8x14x14xf32, #tpu.memory_space<vmem>>, vector<1x14x14xf32>
    %55 = vector.shape_cast %54 : vector<1x14x14xf32> to vector<14x14xf32>
    %56 = vector.shape_cast %53 : vector<14x14xf32> to vector<1x14x14xf32>
    tpu.vector_store %arg2[%c0_45, %c0_46, %c0_47], %56 {strides = array<i32>} : memref<8x14x14xf32, #tpu.memory_space<vmem>>, vector<1x14x14xf32>,
    %c1_48 = arith.constant 1 : index
    %c0_49 = arith.constant 0 : index
    %57 = memref.load %arg1[%c1_48, %c0_49] : memref<8x9xf32, #tpu.memory_space<smem>>
    %58 = vector.broadcast %57 : f32 to vector<14x14xf32>
    %59 = arith.mulf %58, %1 : vector<14x14xf32>
    %c1_50 = arith.constant 1 : index
    %c1_51 = arith.constant 1 : index
    %60 = memref.load %arg1[%c1_50, %c1_51] : memref<8x9xf32, #tpu.memory_space<smem>>
    %61 = vector.broadcast %60 : f32 to vector<14x14xf32>
    %62 = arith.mulf %61, %3 : vector<14x14xf32>
    %63 = arith.addf %59, %62 : vector<14x14xf32>
    %c1_52 = arith.constant 1 : index
    %c2_53 = arith.constant 2 : index
    %64 = memref.load %arg1[%c1_52, %c2_53] : memref<8x9xf32, #tpu.memory_space<smem>>
    %65 = vector.broadcast %64 : f32 to vector<14x14xf32>
    %66 = arith.mulf %65, %5 : vector<14x14xf32>
    %67 = arith.addf %63, %66 : vector<14x14xf32>
    %c1_54 = arith.constant 1 : index
    %c3_55 = arith.constant 3 : index
    %68 = memref.load %arg1[%c1_54, %c3_55] : memref<8x9xf32, #tpu.memory_space<smem>>
    %69 = vector.broadcast %68 : f32 to vector<14x14xf32>
    %70 = arith.mulf %69, %7 : vector<14x14xf32>
    %71 = arith.addf %67, %70 : vector<14x14xf32>
    %c1_56 = arith.constant 1 : index
    %c4_57 = arith.constant 4 : index
    %72 = memref.load %arg1[%c1_56, %c4_57] : memref<8x9xf32, #tpu.memory_space<smem>>
    %73 = vector.broadcast %72 : f32 to vector<14x14xf32>
    %74 = arith.mulf %73, %9 : vector<14x14xf32>
    %75 = arith.addf %71, %74 : vector<14x14xf32>
    %c1_58 = arith.constant 1 : index
    %c5_59 = arith.constant 5 : index
    %76 = memref.load %arg1[%c1_58, %c5_59] : memref<8x9xf32, #tpu.memory_space<smem>>
    %77 = vector.broadcast %76 : f32 to vector<14x14xf32>
    %78 = arith.mulf %77, %11 : vector<14x14xf32>
    %79 = arith.addf %75, %78 : vector<14x14xf32>
    %c1_60 = arith.constant 1 : index
    %c6_61 = arith.constant 6 : index
    %80 = memref.load %arg1[%c1_60, %c6_61] : memref<8x9xf32, #tpu.memory_space<smem>>
    %81 = vector.broadcast %80 : f32 to vector<14x14xf32>
    %82 = arith.mulf %81, %13 : vector<14x14xf32>
    %83 = arith.addf %79, %82 : vector<14x14xf32>
    %c1_62 = arith.constant 1 : index
    %c7_63 = arith.constant 7 : index
    %84 = memref.load %arg1[%c1_62, %c7_63] : memref<8x9xf32, #tpu.memory_space<smem>>
    %85 = vector.broadcast %84 : f32 to vector<14x14xf32>
    %86 = arith.mulf %85, %15 : vector<14x14xf32>
    %87 = arith.addf %83, %86 : vector<14x14xf32>
    %c1_64 = arith.constant 1 : index
    %c8_65 = arith.constant 8 : index
    %88 = memref.load %arg1[%c1_64, %c8_65] : memref<8x9xf32, #tpu.memory_space<smem>>
    %89 = vector.broadcast %88 : f32 to vector<14x14xf32>
    %90 = arith.mulf %89, %17 : vector<14x14xf32>
    %91 = arith.addf %87, %90 : vector<14x14xf32>
    %92 = math.tanh %91 : vector<14x14xf32>
    %c1_66 = arith.constant 1 : index
    %c0_67 = arith.constant 0 : index
    %c0_68 = arith.constant 0 : index
    %93 = vector.load %arg2[%c1_66, %c0_67, %c0_68] : memref<8x14x14xf32, #tpu.memory_space<vmem>>, vector<1x14x14xf32>
    %94 = vector.shape_cast %93 : vector<1x14x14xf32> to vector<14x14xf32>
    %95 = vector.shape_cast %92 : vector<14x14xf32> to vector<1x14x14xf32>
    tpu.vector_store %arg2[%c1_66, %c0_67, %c0_68], %95 {strides = array<i32>} : memref<8x14x14xf32, #tpu.memory_space<vmem>>, vector<1x14x14xf32>,
    %c2_69 = arith.constant 2 : index
    %c0_70 = arith.constant 0 : index
    %96 = memref.load %arg1[%c2_69, %c0_70] : memref<8x9xf32, #tpu.memory_space<smem>>
    %97 = vector.broadcast %96 : f32 to vector<14x14xf32>
    %98 = arith.mulf %97, %1 : vector<14x14xf32>
    %c2_71 = arith.constant 2 : index
    %c1_72 = arith.constant 1 : index
    %99 = memref.load %arg1[%c2_71, %c1_72] : memref<8x9xf32, #tpu.memory_space<smem>>
    %100 = vector.broadcast %99 : f32 to vector<14x14xf32>
    %101 = arith.mulf %100, %3 : vector<14x14xf32>
    %102 = arith.addf %98, %101 : vector<14x14xf32>
    %c2_73 = arith.constant 2 : index
    %c2_74 = arith.constant 2 : index
    %103 = memref.load %arg1[%c2_73, %c2_74] : memref<8x9xf32, #tpu.memory_space<smem>>
    %104 = vector.broadcast %103 : f32 to vector<14x14xf32>
    %105 = arith.mulf %104, %5 : vector<14x14xf32>
    %106 = arith.addf %102, %105 : vector<14x14xf32>
    %c2_75 = arith.constant 2 : index
    %c3_76 = arith.constant 3 : index
    %107 = memref.load %arg1[%c2_75, %c3_76] : memref<8x9xf32, #tpu.memory_space<smem>>
    %108 = vector.broadcast %107 : f32 to vector<14x14xf32>
    %109 = arith.mulf %108, %7 : vector<14x14xf32>
    %110 = arith.addf %106, %109 : vector<14x14xf32>
    %c2_77 = arith.constant 2 : index
    %c4_78 = arith.constant 4 : index
    %111 = memref.load %arg1[%c2_77, %c4_78] : memref<8x9xf32, #tpu.memory_space<smem>>
    %112 = vector.broadcast %111 : f32 to vector<14x14xf32>
    %113 = arith.mulf %112, %9 : vector<14x14xf32>
    %114 = arith.addf %110, %113 : vector<14x14xf32>
    %c2_79 = arith.constant 2 : index
    %c5_80 = arith.constant 5 : index
    %115 = memref.load %arg1[%c2_79, %c5_80] : memref<8x9xf32, #tpu.memory_space<smem>>
    %116 = vector.broadcast %115 : f32 to vector<14x14xf32>
    %117 = arith.mulf %116, %11 : vector<14x14xf32>
    %118 = arith.addf %114, %117 : vector<14x14xf32>
    %c2_81 = arith.constant 2 : index
    %c6_82 = arith.constant 6 : index
    %119 = memref.load %arg1[%c2_81, %c6_82] : memref<8x9xf32, #tpu.memory_space<smem>>
    %120 = vector.broadcast %119 : f32 to vector<14x14xf32>
    %121 = arith.mulf %120, %13 : vector<14x14xf32>
    %122 = arith.addf %118, %121 : vector<14x14xf32>
    %c2_83 = arith.constant 2 : index
    %c7_84 = arith.constant 7 : index
    %123 = memref.load %arg1[%c2_83, %c7_84] : memref<8x9xf32, #tpu.memory_space<smem>>
    %124 = vector.broadcast %123 : f32 to vector<14x14xf32>
    %125 = arith.mulf %124, %15 : vector<14x14xf32>
    %126 = arith.addf %122, %125 : vector<14x14xf32>
    %c2_85 = arith.constant 2 : index
    %c8_86 = arith.constant 8 : index
    %127 = memref.load %arg1[%c2_85, %c8_86] : memref<8x9xf32, #tpu.memory_space<smem>>
    %128 = vector.broadcast %127 : f32 to vector<14x14xf32>
    %129 = arith.mulf %128, %17 : vector<14x14xf32>
    %130 = arith.addf %126, %129 : vector<14x14xf32>
    %131 = math.tanh %130 : vector<14x14xf32>
    %c2_87 = arith.constant 2 : index
    %c0_88 = arith.constant 0 : index
    %c0_89 = arith.constant 0 : index
    %132 = vector.load %arg2[%c2_87, %c0_88, %c0_89] : memref<8x14x14xf32, #tpu.memory_space<vmem>>, vector<1x14x14xf32>
    %133 = vector.shape_cast %132 : vector<1x14x14xf32> to vector<14x14xf32>
    %134 = vector.shape_cast %131 : vector<14x14xf32> to vector<1x14x14xf32>
    tpu.vector_store %arg2[%c2_87, %c0_88, %c0_89], %134 {strides = array<i32>} : memref<8x14x14xf32, #tpu.memory_space<vmem>>, vector<1x14x14xf32>,
    %c3_90 = arith.constant 3 : index
    %c0_91 = arith.constant 0 : index
    %135 = memref.load %arg1[%c3_90, %c0_91] : memref<8x9xf32, #tpu.memory_space<smem>>
    %136 = vector.broadcast %135 : f32 to vector<14x14xf32>
    %137 = arith.mulf %136, %1 : vector<14x14xf32>
    %c3_92 = arith.constant 3 : index
    %c1_93 = arith.constant 1 : index
    %138 = memref.load %arg1[%c3_92, %c1_93] : memref<8x9xf32, #tpu.memory_space<smem>>
    %139 = vector.broadcast %138 : f32 to vector<14x14xf32>
    %140 = arith.mulf %139, %3 : vector<14x14xf32>
    %141 = arith.addf %137, %140 : vector<14x14xf32>
    %c3_94 = arith.constant 3 : index
    %c2_95 = arith.constant 2 : index
    %142 = memref.load %arg1[%c3_94, %c2_95] : memref<8x9xf32, #tpu.memory_space<smem>>
    %143 = vector.broadcast %142 : f32 to vector<14x14xf32>
    %144 = arith.mulf %143, %5 : vector<14x14xf32>
    %145 = arith.addf %141, %144 : vector<14x14xf32>
    %c3_96 = arith.constant 3 : index
    %c3_97 = arith.constant 3 : index
    %146 = memref.load %arg1[%c3_96, %c3_97] : memref<8x9xf32, #tpu.memory_space<smem>>
    %147 = vector.broadcast %146 : f32 to vector<14x14xf32>
    %148 = arith.mulf %147, %7 : vector<14x14xf32>
    %149 = arith.addf %145, %148 : vector<14x14xf32>
    %c3_98 = arith.constant 3 : index
    %c4_99 = arith.constant 4 : index
    %150 = memref.load %arg1[%c3_98, %c4_99] : memref<8x9xf32, #tpu.memory_space<smem>>
    %151 = vector.broadcast %150 : f32 to vector<14x14xf32>
    %152 = arith.mulf %151, %9 : vector<14x14xf32>
    %153 = arith.addf %149, %152 : vector<14x14xf32>
    %c3_100 = arith.constant 3 : index
    %c5_101 = arith.constant 5 : index
    %154 = memref.load %arg1[%c3_100, %c5_101] : memref<8x9xf32, #tpu.memory_space<smem>>
    %155 = vector.broadcast %154 : f32 to vector<14x14xf32>
    %156 = arith.mulf %155, %11 : vector<14x14xf32>
    %157 = arith.addf %153, %156 : vector<14x14xf32>
    %c3_102 = arith.constant 3 : index
    %c6_103 = arith.constant 6 : index
    %158 = memref.load %arg1[%c3_102, %c6_103] : memref<8x9xf32, #tpu.memory_space<smem>>
    %159 = vector.broadcast %158 : f32 to vector<14x14xf32>
    %160 = arith.mulf %159, %13 : vector<14x14xf32>
    %161 = arith.addf %157, %160 : vector<14x14xf32>
    %c3_104 = arith.constant 3 : index
    %c7_105 = arith.constant 7 : index
    %162 = memref.load %arg1[%c3_104, %c7_105] : memref<8x9xf32, #tpu.memory_space<smem>>
    %163 = vector.broadcast %162 : f32 to vector<14x14xf32>
    %164 = arith.mulf %163, %15 : vector<14x14xf32>
    %165 = arith.addf %161, %164 : vector<14x14xf32>
    %c3_106 = arith.constant 3 : index
    %c8_107 = arith.constant 8 : index
    %166 = memref.load %arg1[%c3_106, %c8_107] : memref<8x9xf32, #tpu.memory_space<smem>>
    %167 = vector.broadcast %166 : f32 to vector<14x14xf32>
    %168 = arith.mulf %167, %17 : vector<14x14xf32>
    %169 = arith.addf %165, %168 : vector<14x14xf32>
    %170 = math.tanh %169 : vector<14x14xf32>
    %c3_108 = arith.constant 3 : index
    %c0_109 = arith.constant 0 : index
    %c0_110 = arith.constant 0 : index
    %171 = vector.load %arg2[%c3_108, %c0_109, %c0_110] : memref<8x14x14xf32, #tpu.memory_space<vmem>>, vector<1x14x14xf32>
    %172 = vector.shape_cast %171 : vector<1x14x14xf32> to vector<14x14xf32>
    %173 = vector.shape_cast %170 : vector<14x14xf32> to vector<1x14x14xf32>
    tpu.vector_store %arg2[%c3_108, %c0_109, %c0_110], %173 {strides = array<i32>} : memref<8x14x14xf32, #tpu.memory_space<vmem>>, vector<1x14x14xf32>,
    %c4_111 = arith.constant 4 : index
    %c0_112 = arith.constant 0 : index
    %174 = memref.load %arg1[%c4_111, %c0_112] : memref<8x9xf32, #tpu.memory_space<smem>>
    %175 = vector.broadcast %174 : f32 to vector<14x14xf32>
    %176 = arith.mulf %175, %1 : vector<14x14xf32>
    %c4_113 = arith.constant 4 : index
    %c1_114 = arith.constant 1 : index
    %177 = memref.load %arg1[%c4_113, %c1_114] : memref<8x9xf32, #tpu.memory_space<smem>>
    %178 = vector.broadcast %177 : f32 to vector<14x14xf32>
    %179 = arith.mulf %178, %3 : vector<14x14xf32>
    %180 = arith.addf %176, %179 : vector<14x14xf32>
    %c4_115 = arith.constant 4 : index
    %c2_116 = arith.constant 2 : index
    %181 = memref.load %arg1[%c4_115, %c2_116] : memref<8x9xf32, #tpu.memory_space<smem>>
    %182 = vector.broadcast %181 : f32 to vector<14x14xf32>
    %183 = arith.mulf %182, %5 : vector<14x14xf32>
    %184 = arith.addf %180, %183 : vector<14x14xf32>
    %c4_117 = arith.constant 4 : index
    %c3_118 = arith.constant 3 : index
    %185 = memref.load %arg1[%c4_117, %c3_118] : memref<8x9xf32, #tpu.memory_space<smem>>
    %186 = vector.broadcast %185 : f32 to vector<14x14xf32>
    %187 = arith.mulf %186, %7 : vector<14x14xf32>
    %188 = arith.addf %184, %187 : vector<14x14xf32>
    %c4_119 = arith.constant 4 : index
    %c4_120 = arith.constant 4 : index
    %189 = memref.load %arg1[%c4_119, %c4_120] : memref<8x9xf32, #tpu.memory_space<smem>>
    %190 = vector.broadcast %189 : f32 to vector<14x14xf32>
    %191 = arith.mulf %190, %9 : vector<14x14xf32>
    %192 = arith.addf %188, %191 : vector<14x14xf32>
    %c4_121 = arith.constant 4 : index
    %c5_122 = arith.constant 5 : index
    %193 = memref.load %arg1[%c4_121, %c5_122] : memref<8x9xf32, #tpu.memory_space<smem>>
    %194 = vector.broadcast %193 : f32 to vector<14x14xf32>
    %195 = arith.mulf %194, %11 : vector<14x14xf32>
    %196 = arith.addf %192, %195 : vector<14x14xf32>
    %c4_123 = arith.constant 4 : index
    %c6_124 = arith.constant 6 : index
    %197 = memref.load %arg1[%c4_123, %c6_124] : memref<8x9xf32, #tpu.memory_space<smem>>
    %198 = vector.broadcast %197 : f32 to vector<14x14xf32>
    %199 = arith.mulf %198, %13 : vector<14x14xf32>
    %200 = arith.addf %196, %199 : vector<14x14xf32>
    %c4_125 = arith.constant 4 : index
    %c7_126 = arith.constant 7 : index
    %201 = memref.load %arg1[%c4_125, %c7_126] : memref<8x9xf32, #tpu.memory_space<smem>>
    %202 = vector.broadcast %201 : f32 to vector<14x14xf32>
    %203 = arith.mulf %202, %15 : vector<14x14xf32>
    %204 = arith.addf %200, %203 : vector<14x14xf32>
    %c4_127 = arith.constant 4 : index
    %c8_128 = arith.constant 8 : index
    %205 = memref.load %arg1[%c4_127, %c8_128] : memref<8x9xf32, #tpu.memory_space<smem>>
    %206 = vector.broadcast %205 : f32 to vector<14x14xf32>
    %207 = arith.mulf %206, %17 : vector<14x14xf32>
    %208 = arith.addf %204, %207 : vector<14x14xf32>
    %209 = math.tanh %208 : vector<14x14xf32>
    %c4_129 = arith.constant 4 : index
    %c0_130 = arith.constant 0 : index
    %c0_131 = arith.constant 0 : index
    %210 = vector.load %arg2[%c4_129, %c0_130, %c0_131] : memref<8x14x14xf32, #tpu.memory_space<vmem>>, vector<1x14x14xf32>
    %211 = vector.shape_cast %210 : vector<1x14x14xf32> to vector<14x14xf32>
    %212 = vector.shape_cast %209 : vector<14x14xf32> to vector<1x14x14xf32>
    tpu.vector_store %arg2[%c4_129, %c0_130, %c0_131], %212 {strides = array<i32>} : memref<8x14x14xf32, #tpu.memory_space<vmem>>, vector<1x14x14xf32>,
    %c5_132 = arith.constant 5 : index
    %c0_133 = arith.constant 0 : index
    %213 = memref.load %arg1[%c5_132, %c0_133] : memref<8x9xf32, #tpu.memory_space<smem>>
    %214 = vector.broadcast %213 : f32 to vector<14x14xf32>
    %215 = arith.mulf %214, %1 : vector<14x14xf32>
    %c5_134 = arith.constant 5 : index
    %c1_135 = arith.constant 1 : index
    %216 = memref.load %arg1[%c5_134, %c1_135] : memref<8x9xf32, #tpu.memory_space<smem>>
    %217 = vector.broadcast %216 : f32 to vector<14x14xf32>
    %218 = arith.mulf %217, %3 : vector<14x14xf32>
    %219 = arith.addf %215, %218 : vector<14x14xf32>
    %c5_136 = arith.constant 5 : index
    %c2_137 = arith.constant 2 : index
    %220 = memref.load %arg1[%c5_136, %c2_137] : memref<8x9xf32, #tpu.memory_space<smem>>
    %221 = vector.broadcast %220 : f32 to vector<14x14xf32>
    %222 = arith.mulf %221, %5 : vector<14x14xf32>
    %223 = arith.addf %219, %222 : vector<14x14xf32>
    %c5_138 = arith.constant 5 : index
    %c3_139 = arith.constant 3 : index
    %224 = memref.load %arg1[%c5_138, %c3_139] : memref<8x9xf32, #tpu.memory_space<smem>>
    %225 = vector.broadcast %224 : f32 to vector<14x14xf32>
    %226 = arith.mulf %225, %7 : vector<14x14xf32>
    %227 = arith.addf %223, %226 : vector<14x14xf32>
    %c5_140 = arith.constant 5 : index
    %c4_141 = arith.constant 4 : index
    %228 = memref.load %arg1[%c5_140, %c4_141] : memref<8x9xf32, #tpu.memory_space<smem>>
    %229 = vector.broadcast %228 : f32 to vector<14x14xf32>
    %230 = arith.mulf %229, %9 : vector<14x14xf32>
    %231 = arith.addf %227, %230 : vector<14x14xf32>
    %c5_142 = arith.constant 5 : index
    %c5_143 = arith.constant 5 : index
    %232 = memref.load %arg1[%c5_142, %c5_143] : memref<8x9xf32, #tpu.memory_space<smem>>
    %233 = vector.broadcast %232 : f32 to vector<14x14xf32>
    %234 = arith.mulf %233, %11 : vector<14x14xf32>
    %235 = arith.addf %231, %234 : vector<14x14xf32>
    %c5_144 = arith.constant 5 : index
    %c6_145 = arith.constant 6 : index
    %236 = memref.load %arg1[%c5_144, %c6_145] : memref<8x9xf32, #tpu.memory_space<smem>>
    %237 = vector.broadcast %236 : f32 to vector<14x14xf32>
    %238 = arith.mulf %237, %13 : vector<14x14xf32>
    %239 = arith.addf %235, %238 : vector<14x14xf32>
    %c5_146 = arith.constant 5 : index
    %c7_147 = arith.constant 7 : index
    %240 = memref.load %arg1[%c5_146, %c7_147] : memref<8x9xf32, #tpu.memory_space<smem>>
    %241 = vector.broadcast %240 : f32 to vector<14x14xf32>
    %242 = arith.mulf %241, %15 : vector<14x14xf32>
    %243 = arith.addf %239, %242 : vector<14x14xf32>
    %c5_148 = arith.constant 5 : index
    %c8_149 = arith.constant 8 : index
    %244 = memref.load %arg1[%c5_148, %c8_149] : memref<8x9xf32, #tpu.memory_space<smem>>
    %245 = vector.broadcast %244 : f32 to vector<14x14xf32>
    %246 = arith.mulf %245, %17 : vector<14x14xf32>
    %247 = arith.addf %243, %246 : vector<14x14xf32>
    %248 = math.tanh %247 : vector<14x14xf32>
    %c5_150 = arith.constant 5 : index
    %c0_151 = arith.constant 0 : index
    %c0_152 = arith.constant 0 : index
    %249 = vector.load %arg2[%c5_150, %c0_151, %c0_152] : memref<8x14x14xf32, #tpu.memory_space<vmem>>, vector<1x14x14xf32>
    %250 = vector.shape_cast %249 : vector<1x14x14xf32> to vector<14x14xf32>
    %251 = vector.shape_cast %248 : vector<14x14xf32> to vector<1x14x14xf32>
    tpu.vector_store %arg2[%c5_150, %c0_151, %c0_152], %251 {strides = array<i32>} : memref<8x14x14xf32, #tpu.memory_space<vmem>>, vector<1x14x14xf32>,
    %c6_153 = arith.constant 6 : index
    %c0_154 = arith.constant 0 : index
    %252 = memref.load %arg1[%c6_153, %c0_154] : memref<8x9xf32, #tpu.memory_space<smem>>
    %253 = vector.broadcast %252 : f32 to vector<14x14xf32>
    %254 = arith.mulf %253, %1 : vector<14x14xf32>
    %c6_155 = arith.constant 6 : index
    %c1_156 = arith.constant 1 : index
    %255 = memref.load %arg1[%c6_155, %c1_156] : memref<8x9xf32, #tpu.memory_space<smem>>
    %256 = vector.broadcast %255 : f32 to vector<14x14xf32>
    %257 = arith.mulf %256, %3 : vector<14x14xf32>
    %258 = arith.addf %254, %257 : vector<14x14xf32>
    %c6_157 = arith.constant 6 : index
    %c2_158 = arith.constant 2 : index
    %259 = memref.load %arg1[%c6_157, %c2_158] : memref<8x9xf32, #tpu.memory_space<smem>>
    %260 = vector.broadcast %259 : f32 to vector<14x14xf32>
    %261 = arith.mulf %260, %5 : vector<14x14xf32>
    %262 = arith.addf %258, %261 : vector<14x14xf32>
    %c6_159 = arith.constant 6 : index
    %c3_160 = arith.constant 3 : index
    %263 = memref.load %arg1[%c6_159, %c3_160] : memref<8x9xf32, #tpu.memory_space<smem>>
    %264 = vector.broadcast %263 : f32 to vector<14x14xf32>
    %265 = arith.mulf %264, %7 : vector<14x14xf32>
    %266 = arith.addf %262, %265 : vector<14x14xf32>
    %c6_161 = arith.constant 6 : index
    %c4_162 = arith.constant 4 : index
    %267 = memref.load %arg1[%c6_161, %c4_162] : memref<8x9xf32, #tpu.memory_space<smem>>
    %268 = vector.broadcast %267 : f32 to vector<14x14xf32>
    %269 = arith.mulf %268, %9 : vector<14x14xf32>
    %270 = arith.addf %266, %269 : vector<14x14xf32>
    %c6_163 = arith.constant 6 : index
    %c5_164 = arith.constant 5 : index
    %271 = memref.load %arg1[%c6_163, %c5_164] : memref<8x9xf32, #tpu.memory_space<smem>>
    %272 = vector.broadcast %271 : f32 to vector<14x14xf32>
    %273 = arith.mulf %272, %11 : vector<14x14xf32>
    %274 = arith.addf %270, %273 : vector<14x14xf32>
    %c6_165 = arith.constant 6 : index
    %c6_166 = arith.constant 6 : index
    %275 = memref.load %arg1[%c6_165, %c6_166] : memref<8x9xf32, #tpu.memory_space<smem>>
    %276 = vector.broadcast %275 : f32 to vector<14x14xf32>
    %277 = arith.mulf %276, %13 : vector<14x14xf32>
    %278 = arith.addf %274, %277 : vector<14x14xf32>
    %c6_167 = arith.constant 6 : index
    %c7_168 = arith.constant 7 : index
    %279 = memref.load %arg1[%c6_167, %c7_168] : memref<8x9xf32, #tpu.memory_space<smem>>
    %280 = vector.broadcast %279 : f32 to vector<14x14xf32>
    %281 = arith.mulf %280, %15 : vector<14x14xf32>
    %282 = arith.addf %278, %281 : vector<14x14xf32>
    %c6_169 = arith.constant 6 : index
    %c8_170 = arith.constant 8 : index
    %283 = memref.load %arg1[%c6_169, %c8_170] : memref<8x9xf32, #tpu.memory_space<smem>>
    %284 = vector.broadcast %283 : f32 to vector<14x14xf32>
    %285 = arith.mulf %284, %17 : vector<14x14xf32>
    %286 = arith.addf %282, %285 : vector<14x14xf32>
    %287 = math.tanh %286 : vector<14x14xf32>
    %c6_171 = arith.constant 6 : index
    %c0_172 = arith.constant 0 : index
    %c0_173 = arith.constant 0 : index
    %288 = vector.load %arg2[%c6_171, %c0_172, %c0_173] : memref<8x14x14xf32, #tpu.memory_space<vmem>>, vector<1x14x14xf32>
    %289 = vector.shape_cast %288 : vector<1x14x14xf32> to vector<14x14xf32>
    %290 = vector.shape_cast %287 : vector<14x14xf32> to vector<1x14x14xf32>
    tpu.vector_store %arg2[%c6_171, %c0_172, %c0_173], %290 {strides = array<i32>} : memref<8x14x14xf32, #tpu.memory_space<vmem>>, vector<1x14x14xf32>,
    %c7_174 = arith.constant 7 : index
    %c0_175 = arith.constant 0 : index
    %291 = memref.load %arg1[%c7_174, %c0_175] : memref<8x9xf32, #tpu.memory_space<smem>>
    %292 = vector.broadcast %291 : f32 to vector<14x14xf32>
    %293 = arith.mulf %292, %1 : vector<14x14xf32>
    %c7_176 = arith.constant 7 : index
    %c1_177 = arith.constant 1 : index
    %294 = memref.load %arg1[%c7_176, %c1_177] : memref<8x9xf32, #tpu.memory_space<smem>>
    %295 = vector.broadcast %294 : f32 to vector<14x14xf32>
    %296 = arith.mulf %295, %3 : vector<14x14xf32>
    %297 = arith.addf %293, %296 : vector<14x14xf32>
    %c7_178 = arith.constant 7 : index
    %c2_179 = arith.constant 2 : index
    %298 = memref.load %arg1[%c7_178, %c2_179] : memref<8x9xf32, #tpu.memory_space<smem>>
    %299 = vector.broadcast %298 : f32 to vector<14x14xf32>
    %300 = arith.mulf %299, %5 : vector<14x14xf32>
    %301 = arith.addf %297, %300 : vector<14x14xf32>
    %c7_180 = arith.constant 7 : index
    %c3_181 = arith.constant 3 : index
    %302 = memref.load %arg1[%c7_180, %c3_181] : memref<8x9xf32, #tpu.memory_space<smem>>
    %303 = vector.broadcast %302 : f32 to vector<14x14xf32>
    %304 = arith.mulf %303, %7 : vector<14x14xf32>
    %305 = arith.addf %301, %304 : vector<14x14xf32>
    %c7_182 = arith.constant 7 : index
    %c4_183 = arith.constant 4 : index
    %306 = memref.load %arg1[%c7_182, %c4_183] : memref<8x9xf32, #tpu.memory_space<smem>>
    %307 = vector.broadcast %306 : f32 to vector<14x14xf32>
    %308 = arith.mulf %307, %9 : vector<14x14xf32>
    %309 = arith.addf %305, %308 : vector<14x14xf32>
    %c7_184 = arith.constant 7 : index
    %c5_185 = arith.constant 5 : index
    %310 = memref.load %arg1[%c7_184, %c5_185] : memref<8x9xf32, #tpu.memory_space<smem>>
    %311 = vector.broadcast %310 : f32 to vector<14x14xf32>
    %312 = arith.mulf %311, %11 : vector<14x14xf32>
    %313 = arith.addf %309, %312 : vector<14x14xf32>
    %c7_186 = arith.constant 7 : index
    %c6_187 = arith.constant 6 : index
    %314 = memref.load %arg1[%c7_186, %c6_187] : memref<8x9xf32, #tpu.memory_space<smem>>
    %315 = vector.broadcast %314 : f32 to vector<14x14xf32>
    %316 = arith.mulf %315, %13 : vector<14x14xf32>
    %317 = arith.addf %313, %316 : vector<14x14xf32>
    %c7_188 = arith.constant 7 : index
    %c7_189 = arith.constant 7 : index
    %318 = memref.load %arg1[%c7_188, %c7_189] : memref<8x9xf32, #tpu.memory_space<smem>>
    %319 = vector.broadcast %318 : f32 to vector<14x14xf32>
    %320 = arith.mulf %319, %15 : vector<14x14xf32>
    %321 = arith.addf %317, %320 : vector<14x14xf32>
    %c7_190 = arith.constant 7 : index
    %c8_191 = arith.constant 8 : index
    %322 = memref.load %arg1[%c7_190, %c8_191] : memref<8x9xf32, #tpu.memory_space<smem>>
    %323 = vector.broadcast %322 : f32 to vector<14x14xf32>
    %324 = arith.mulf %323, %17 : vector<14x14xf32>
    %325 = arith.addf %321, %324 : vector<14x14xf32>
    %326 = math.tanh %325 : vector<14x14xf32>
    %c7_192 = arith.constant 7 : index
    %c0_193 = arith.constant 0 : index
    %c0_194 = arith.constant 0 : index
    %327 = vector.load %arg2[%c7_192, %c0_193, %c0_194] : memref<8x14x14xf32, #tpu.memory_space<vmem>>, vector<1x14x14xf32>
    %328 = vector.shape_cast %327 : vector<1x14x14xf32> to vector<14x14xf32>
    %329 = vector.shape_cast %326 : vector<14x14xf32> to vector<1x14x14xf32>
    tpu.vector_store %arg2[%c7_192, %c0_193, %c0_194], %329 {strides = array<i32>} : memref<8x14x14xf32, #tpu.memory_space<vmem>>, vector<1x14x14xf32>,
    return
  }
}

</mosaic_0001>

<llo_original>
// kernel: conv2d_tanh.1
$region0: #{conv2d_tanh.1}
  #allocation0 [shape = 'u32[]', space=smem, size = 0x4, offset = 0x4, fixed_abs, tag = 'smem constant byte address 0x4 - core index']
  #allocation1 [shape = 'u32[144,128]{1,0:T(1,128)}', space=vmem, size = 0x12000, scoped, tag = 'internal scratch']
  %s0 = inlined_call_operand.vmem [shape: f32[2,2,15,15], index: 0, kind: input, shape index: {}]
  %s1 = inlined_call_operand.vmem [shape: f32[8,9], index: 1, kind: input, shape index: {}]
  %s2 = inlined_call_operand.vmem [shape: f32[8,14,14], index: 2, kind: output, shape index: {}]
  %s3 = sld [smem:[#allocation0]]
  $region22: #{conv2d_tanh.1} parent=0
    _
  %s5 = ssub.s32 1, %s3
  %s6 = scalar_select 0, %s5, %s3
  $region1: #{conv2d_tanh.1} parent=0
    #allocation2 [shape = 'u8[4096]{0}', space=smem, size = 0x1000, scoped, tag = 'input window, operand 1, single buffered']
    #allocation3 [shape = 's32[1]{0}', space=sflag, size = 0x4, scoped, tag = 'scoped memory for conv2d_tanh.1']
    %7 = vsyncpa [#allocation3], 0
    // Predicated region
    $region2: #{conv2d_tanh.1} parent=1 // pred_check
      _
    $region3: #{conv2d_tanh.1} parent=1 // pred_check_branch
      %9 = sbr.rel (0) target = $region5
    $region4: #{conv2d_tanh.1} parent=1 // pred_region
      _
    $region5: #{conv2d_tanh.1} parent=1 // pred_fallthru
      _
    // Predicated region
    $region6: #{conv2d_tanh.1} parent=1 // pred_check
      _
    $region7: #{conv2d_tanh.1} parent=1 // pred_check_branch
      %11 = sbr.rel (0) target = $region9
    $region8: #{conv2d_tanh.1} parent=1 // pred_region
      %s13 = ssub.s32 128, 128
      %14 = vsyncadd [#allocation3], %s13
      %s16 = sshll.u32 %s1, 4
      %s17 = int_to_ptr.vmem [resolvable:$true] %s16
      %19 = dma.vmem_to_smem %s17, 128, [#allocation2], [#allocation3]
    $region9: #{conv2d_tanh.1} parent=1 // pred_fallthru
      _
    // Predicated region
    $region10: #{conv2d_tanh.1} parent=1 // pred_check
      _
    $region11: #{conv2d_tanh.1} parent=1 // pred_check_branch
      %21 = sbr.rel (0) target = $region13
    $region12: #{conv2d_tanh.1} parent=1 // pred_region
      %22 = dma.done [#allocation3], 128
    $region13: #{conv2d_tanh.1} parent=1 // pred_fallthru
      _
    %23 = sfence
    %v24 = vld [vmem:[%s0] sm:$0xff]
    %v25 = vld [vmem:[%s0 + $0x8] sm:$0x3f]
    %s26 = scalar_lea.vmem %s0, 16
    %v27 = vld [vmem:[%s26] sm:$0xff]
    %v28 = vld [vmem:[%s26 + $0x8] sm:$0x3f]
    %s29 = scalar_lea.vmem %s0, 32
    %v30 = vld [vmem:[%s29] sm:$0xff]
    %v31 = vld [vmem:[%s29 + $0x8] sm:$0x3f]
    %s32 = scalar_lea.vmem %s0, 48
    %v33 = vld [vmem:[%s32] sm:$0xff]
    %v34 = vld [vmem:[%s32 + $0x8] sm:$0x3f]
    %v35 = vld [vmem:[%s0 + $0x1] sm:$0xff]
    %v36 = vld [vmem:[%s0 + $0x9] sm:$0x3f]
    %v37 = vld [vmem:[%s26 + $0x1] sm:$0xff]
    %v38 = vld [vmem:[%s26 + $0x9] sm:$0x3f]
    %s39 = sld [smem:[#allocation2]]
    %v40 = vstv %s39
    %v41 = vmul.f32 %v40, %v24
    %v42 = vmul.f32 %v40, %v25
    %s43 = sld [smem:[#allocation2 + $0x1]]
    %v44 = vstv %s43
    %v45 = vmul.f32 %v44, %v27
    %v46 = vmul.f32 %v44, %v28
    %v47 = vadd.f32 %v41, %v45
    %v48 = vadd.f32 %v42, %v46
    %s49 = sld [smem:[#allocation2 + $0x2]]
    %v50 = vstv %s49
    %v51 = vmul.f32 %v50, %v24
    %v52 = vmul.f32 %v50, %v25
    %55 = vrot.lane.b32.xlu0 %v51, 127
    %v56 = vpop.permute.xlu0 %55
    %57 = vrot.lane.b32.xlu0 %v52, 127
    %v58 = vpop.permute.xlu0 %57
    %v61 = vadd.f32 %v47, %v56
    %v62 = vadd.f32 %v48, %v58
    %s63 = sld [smem:[#allocation2 + $0x3]]
    %v64 = vstv %s63
    %v65 = vmul.f32 %v64, %v30
    %v66 = vmul.f32 %v64, %v31
    %v67 = vadd.f32 %v61, %v65
    %v68 = vadd.f32 %v62, %v66
    %s69 = sld [smem:[#allocation2 + $0x4]]
    %v70 = vstv %s69
    %v71 = vmul.f32 %v70, %v33
    %v72 = vmul.f32 %v70, %v34
    %v73 = vadd.f32 %v67, %v71
    %v74 = vadd.f32 %v68, %v72
    %s75 = sld [smem:[#allocation2 + $0x5]]
    %v76 = vstv %s75
    %v77 = vmul.f32 %v76, %v30
    %v78 = vmul.f32 %v76, %v31
    %81 = vrot.lane.b32.xlu0 %v77, 127
    %v82 = vpop.permute.xlu0 %81
    %83 = vrot.lane.b32.xlu0 %v78, 127
    %v84 = vpop.permute.xlu0 %83
    %v87 = vadd.f32 %v73, %v82
    %v88 = vadd.f32 %v74, %v84
    %s89 = sld [smem:[#allocation2 + $0x6]]
    %v90 = vstv %s89
    %v91 = vmul.f32 %v90, %v35
    %v92 = vmul.f32 %v90, %v36
    %v93 = vadd.f32 %v87, %v91
    %v94 = vadd.f32 %v88, %v92
    %s95 = sld [smem:[#allocation2 + $0x7]]
    %v96 = vstv %s95
    %v97 = vmul.f32 %v96, %v37
    %v98 = vmul.f32 %v96, %v38
    %v99 = vadd.f32 %v93, %v97
    %v100 = vadd.f32 %v94, %v98
    %s101 = sld [smem:[#allocation2 + $0x8]]
    %v102 = vstv %s101
    %v103 = vmul.f32 %v102, %v35
    %v104 = vmul.f32 %v102, %v36
    %107 = vrot.lane.b32.xlu0 %v103, 127
    %v108 = vpop.permute.xlu0 %107
    %109 = vrot.lane.b32.xlu0 %v104, 127
    %v110 = vpop.permute.xlu0 %109
    %v113 = vadd.f32 %v99, %v108
    %v114 = vadd.f32 %v100, %v110
    %v115 = vtanh.pop %v113
    %v116 = vtanh.pop %v114
    %vm117 = vcmask 113664
    %118 = vst.msk [vmem:[%s2] sm:$0xff] %vm117, %v115
    %vm119 = vcmask 111616
    %120 = vst.msk [vmem:[%s2 + $0x8] sm:$0x3f] %vm119, %v116
    %s121 = sld [smem:[#allocation2 + $0x80]]
    %v122 = vstv %s121
    %v123 = vmul.f32 %v122, %v24
    %v124 = vmul.f32 %v122, %v25
    %s125 = sld [smem:[#allocation2 + $0x81]]
    %v126 = vstv %s125
    %v127 = vmul.f32 %v126, %v27
    %v128 = vmul.f32 %v126, %v28
    %v129 = vadd.f32 %v123, %v127
    %v130 = vadd.f32 %v124, %v128
    %s131 = sld [smem:[#allocation2 + $0x82]]
    %v132 = vstv %s131
    %v133 = vmul.f32 %v132, %v24
    %v134 = vmul.f32 %v132, %v25
    %137 = vrot.lane.b32.xlu0 %v133, 127
    %v138 = vpop.permute.xlu0 %137
    %139 = vrot.lane.b32.xlu0 %v134, 127
    %v140 = vpop.permute.xlu0 %139
    %v143 = vadd.f32 %v129, %v138
    %v144 = vadd.f32 %v130, %v140
    %s145 = sld [smem:[#allocation2 + $0x83]]
    %v146 = vstv %s145
    %v147 = vmul.f32 %v146, %v30
    %v148 = vmul.f32 %v146, %v31
    %v149 = vadd.f32 %v143, %v147
    %v150 = vadd.f32 %v144, %v148
    %s151 = sld [smem:[#allocation2 + $0x84]]
    %v152 = vstv %s151
    %v153 = vmul.f32 %v152, %v33
    %v154 = vmul.f32 %v152, %v34
    %v155 = vadd.f32 %v149, %v153
    %v156 = vadd.f32 %v150, %v154
    %s157 = sld [smem:[#allocation2 + $0x85]]
    %v158 = vstv %s157
    %v159 = vmul.f32 %v158, %v30
    %v160 = vmul.f32 %v158, %v31
    %163 = vrot.lane.b32.xlu0 %v159, 127
    %v164 = vpop.permute.xlu0 %163
    %165 = vrot.lane.b32.xlu0 %v160, 127
    %v166 = vpop.permute.xlu0 %165
    %v169 = vadd.f32 %v155, %v164
    %v170 = vadd.f32 %v156, %v166
    %s171 = sld [smem:[#allocation2 + $0x86]]
    %v172 = vstv %s171
    %v173 = vmul.f32 %v172, %v35
    %v174 = vmul.f32 %v172, %v36
    %v175 = vadd.f32 %v169, %v173
    %v176 = vadd.f32 %v170, %v174
    %s177 = sld [smem:[#allocation2 + $0x87]]
    %v178 = vstv %s177
    %v179 = vmul.f32 %v178, %v37
    %v180 = vmul.f32 %v178, %v38
    %v181 = vadd.f32 %v175, %v179
    %v182 = vadd.f32 %v176, %v180
    %s183 = sld [smem:[#allocation2 + $0x88]]
    %v184 = vstv %s183
    %v185 = vmul.f32 %v184, %v35
    %v186 = vmul.f32 %v184, %v36
    %189 = vrot.lane.b32.xlu0 %v185, 127
    %v190 = vpop.permute.xlu0 %189
    %191 = vrot.lane.b32.xlu0 %v186, 127
    %v192 = vpop.permute.xlu0 %191
    %v195 = vadd.f32 %v181, %v190
    %v196 = vadd.f32 %v182, %v192
    %v197 = vtanh.pop %v195
    %v198 = vtanh.pop %v196
    %s199 = scalar_lea.vmem %s2, 16
    %200 = vst.msk [vmem:[%s199] sm:$0xff] %vm117, %v197
    %201 = vst.msk [vmem:[%s199 + $0x8] sm:$0x3f] %vm119, %v198
    %s202 = sld [smem:[#allocation2 + $0x100]]
    %v203 = vstv %s202
    %v204 = vmul.f32 %v203, %v24
    %v205 = vmul.f32 %v203, %v25
    %s206 = sld [smem:[#allocation2 + $0x101]]
    %v207 = vstv %s206
    %v208 = vmul.f32 %v207, %v27
    %v209 = vmul.f32 %v207, %v28
    %v210 = vadd.f32 %v204, %v208
    %v211 = vadd.f32 %v205, %v209
    %s212 = sld [smem:[#allocation2 + $0x102]]
    %v213 = vstv %s212
    %v214 = vmul.f32 %v213, %v24
    %v215 = vmul.f32 %v213, %v25
    %218 = vrot.lane.b32.xlu0 %v214, 127
    %v219 = vpop.permute.xlu0 %218
    %220 = vrot.lane.b32.xlu0 %v215, 127
    %v221 = vpop.permute.xlu0 %220
    %v224 = vadd.f32 %v210, %v219
    %v225 = vadd.f32 %v211, %v221
    %s226 = sld [smem:[#allocation2 + $0x103]]
    %v227 = vstv %s226
    %v228 = vmul.f32 %v227, %v30
    %v229 = vmul.f32 %v227, %v31
    %v230 = vadd.f32 %v224, %v228
    %v231 = vadd.f32 %v225, %v229
    %s232 = sld [smem:[#allocation2 + $0x104]]
    %v233 = vstv %s232
    %v234 = vmul.f32 %v233, %v33
    %v235 = vmul.f32 %v233, %v34
    %v236 = vadd.f32 %v230, %v234
    %v237 = vadd.f32 %v231, %v235
    %s238 = sld [smem:[#allocation2 + $0x105]]
    %v239 = vstv %s238
    %v240 = vmul.f32 %v239, %v30
    %v241 = vmul.f32 %v239, %v31
    %244 = vrot.lane.b32.xlu0 %v240, 127
    %v245 = vpop.permute.xlu0 %244
    %246 = vrot.lane.b32.xlu0 %v241, 127
    %v247 = vpop.permute.xlu0 %246
    %v250 = vadd.f32 %v236, %v245
    %v251 = vadd.f32 %v237, %v247
    %s252 = sld [smem:[#allocation2 + $0x106]]
    %v253 = vstv %s252
    %v254 = vmul.f32 %v253, %v35
    %v255 = vmul.f32 %v253, %v36
    %v256 = vadd.f32 %v250, %v254
    %v257 = vadd.f32 %v251, %v255
    %s258 = sld [smem:[#allocation2 + $0x107]]
    %v259 = vstv %s258
    %v260 = vmul.f32 %v259, %v37
    %v261 = vmul.f32 %v259, %v38
    %v262 = vadd.f32 %v256, %v260
    %v263 = vadd.f32 %v257, %v261
    %s264 = sld [smem:[#allocation2 + $0x108]]
    %v265 = vstv %s264
    %v266 = vmul.f32 %v265, %v35
    %v267 = vmul.f32 %v265, %v36
    %270 = vrot.lane.b32.xlu0 %v266, 127
    %v271 = vpop.permute.xlu0 %270
    %272 = vrot.lane.b32.xlu0 %v267, 127
    %v273 = vpop.permute.xlu0 %272
    %v276 = vadd.f32 %v262, %v271
    %v277 = vadd.f32 %v263, %v273
    %v278 = vtanh.pop %v276
    %v279 = vtanh.pop %v277
    %s280 = scalar_lea.vmem %s2, 32
    %281 = vst.msk [vmem:[%s280] sm:$0xff] %vm117, %v278
    %282 = vst.msk [vmem:[%s280 + $0x8] sm:$0x3f] %vm119, %v279
    %s283 = sld [smem:[#allocation2 + $0x180]]
    %v284 = vstv %s283
    %v285 = vmul.f32 %v284, %v24
    %v286 = vmul.f32 %v284, %v25
    %s287 = sld [smem:[#allocation2 + $0x181]]
    %v288 = vstv %s287
    %v289 = vmul.f32 %v288, %v27
    %v290 = vmul.f32 %v288, %v28
    %v291 = vadd.f32 %v285, %v289
    %v292 = vadd.f32 %v286, %v290
    %s293 = sld [smem:[#allocation2 + $0x182]]
    %v294 = vstv %s293
    %v295 = vmul.f32 %v294, %v24
    %v296 = vmul.f32 %v294, %v25
    %299 = vrot.lane.b32.xlu0 %v295, 127
    %v300 = vpop.permute.xlu0 %299
    %301 = vrot.lane.b32.xlu0 %v296, 127
    %v302 = vpop.permute.xlu0 %301
    %v305 = vadd.f32 %v291, %v300
    %v306 = vadd.f32 %v292, %v302
    %s307 = sld [smem:[#allocation2 + $0x183]]
    %v308 = vstv %s307
    %v309 = vmul.f32 %v308, %v30
    %v310 = vmul.f32 %v308, %v31
    %v311 = vadd.f32 %v305, %v309
    %v312 = vadd.f32 %v306, %v310
    %s313 = sld [smem:[#allocation2 + $0x184]]
    %v314 = vstv %s313
    %v315 = vmul.f32 %v314, %v33
    %v316 = vmul.f32 %v314, %v34
    %v317 = vadd.f32 %v311, %v315
    %v318 = vadd.f32 %v312, %v316
    %s319 = sld [smem:[#allocation2 + $0x185]]
    %v320 = vstv %s319
    %v321 = vmul.f32 %v320, %v30
    %v322 = vmul.f32 %v320, %v31
    %325 = vrot.lane.b32.xlu0 %v321, 127
    %v326 = vpop.permute.xlu0 %325
    %327 = vrot.lane.b32.xlu0 %v322, 127
    %v328 = vpop.permute.xlu0 %327
    %v331 = vadd.f32 %v317, %v326
    %v332 = vadd.f32 %v318, %v328
    %s333 = sld [smem:[#allocation2 + $0x186]]
    %v334 = vstv %s333
    %v335 = vmul.f32 %v334, %v35
    %v336 = vmul.f32 %v334, %v36
    %v337 = vadd.f32 %v331, %v335
    %v338 = vadd.f32 %v332, %v336
    %s339 = sld [smem:[#allocation2 + $0x187]]
    %v340 = vstv %s339
    %v341 = vmul.f32 %v340, %v37
    %v342 = vmul.f32 %v340, %v38
    %v343 = vadd.f32 %v337, %v341
    %v344 = vadd.f32 %v338, %v342
    %s345 = sld [smem:[#allocation2 + $0x188]]
    %v346 = vstv %s345
    %v347 = vmul.f32 %v346, %v35
    %v348 = vmul.f32 %v346, %v36
    %351 = vrot.lane.b32.xlu0 %v347, 127
    %v352 = vpop.permute.xlu0 %351
    %353 = vrot.lane.b32.xlu0 %v348, 127
    %v354 = vpop.permute.xlu0 %353
    %v357 = vadd.f32 %v343, %v352
    %v358 = vadd.f32 %v344, %v354
    %v359 = vtanh.pop %v357
    %v360 = vtanh.pop %v358
    %s361 = scalar_lea.vmem %s2, 48
    %362 = vst.msk [vmem:[%s361] sm:$0xff] %vm117, %v359
    %363 = vst.msk [vmem:[%s361 + $0x8] sm:$0x3f] %vm119, %v360
    %s364 = sld [smem:[#allocation2 + $0x200]]
    %v365 = vstv %s364
    %v366 = vmul.f32 %v365, %v24
    %v367 = vmul.f32 %v365, %v25
    %s368 = sld [smem:[#allocation2 + $0x201]]
    %v369 = vstv %s368
    %v370 = vmul.f32 %v369, %v27
    %v371 = vmul.f32 %v369, %v28
    %v372 = vadd.f32 %v366, %v370
    %v373 = vadd.f32 %v367, %v371
    %s374 = sld [smem:[#allocation2 + $0x202]]
    %v375 = vstv %s374
    %v376 = vmul.f32 %v375, %v24
    %v377 = vmul.f32 %v375, %v25
    %380 = vrot.lane.b32.xlu0 %v376, 127
    %v381 = vpop.permute.xlu0 %380
    %382 = vrot.lane.b32.xlu0 %v377, 127
    %v383 = vpop.permute.xlu0 %382
    %v386 = vadd.f32 %v372, %v381
    %v387 = vadd.f32 %v373, %v383
    %s388 = sld [smem:[#allocation2 + $0x203]]
    %v389 = vstv %s388
    %v390 = vmul.f32 %v389, %v30
    %v391 = vmul.f32 %v389, %v31
    %v392 = vadd.f32 %v386, %v390
    %v393 = vadd.f32 %v387, %v391
    %s394 = sld [smem:[#allocation2 + $0x204]]
    %v395 = vstv %s394
    %v396 = vmul.f32 %v395, %v33
    %v397 = vmul.f32 %v395, %v34
    %v398 = vadd.f32 %v392, %v396
    %v399 = vadd.f32 %v393, %v397
    %s400 = sld [smem:[#allocation2 + $0x205]]
    %v401 = vstv %s400
    %v402 = vmul.f32 %v401, %v30
    %v403 = vmul.f32 %v401, %v31
    %406 = vrot.lane.b32.xlu0 %v402, 127
    %v407 = vpop.permute.xlu0 %406
    %408 = vrot.lane.b32.xlu0 %v403, 127
    %v409 = vpop.permute.xlu0 %408
    %v412 = vadd.f32 %v398, %v407
    %v413 = vadd.f32 %v399, %v409
    %s414 = sld [smem:[#allocation2 + $0x206]]
    %v415 = vstv %s414
    %v416 = vmul.f32 %v415, %v35
    %v417 = vmul.f32 %v415, %v36
    %v418 = vadd.f32 %v412, %v416
    %v419 = vadd.f32 %v413, %v417
    %s420 = sld [smem:[#allocation2 + $0x207]]
    %v421 = vstv %s420
    %v422 = vmul.f32 %v421, %v37
    %v423 = vmul.f32 %v421, %v38
    %v424 = vadd.f32 %v418, %v422
    %v425 = vadd.f32 %v419, %v423
    %s426 = sld [smem:[#allocation2 + $0x208]]
    %v427 = vstv %s426
    %v428 = vmul.f32 %v427, %v35
    %v429 = vmul.f32 %v427, %v36
    %432 = vrot.lane.b32.xlu0 %v428, 127
    %v433 = vpop.permute.xlu0 %432
    %434 = vrot.lane.b32.xlu0 %v429, 127
    %v435 = vpop.permute.xlu0 %434
    %v438 = vadd.f32 %v424, %v433
    %v439 = vadd.f32 %v425, %v435
    %v440 = vtanh.pop %v438
    %v441 = vtanh.pop %v439
    %s442 = scalar_lea.vmem %s2, 64
    %443 = vst.msk [vmem:[%s442] sm:$0xff] %vm117, %v440
    %444 = vst.msk [vmem:[%s442 + $0x8] sm:$0x3f] %vm119, %v441
    %s445 = sld [smem:[#allocation2 + $0x280]]
    %v446 = vstv %s445
    %v447 = vmul.f32 %v446, %v24
    %v448 = vmul.f32 %v446, %v25
    %s449 = sld [smem:[#allocation2 + $0x281]]
    %v450 = vstv %s449
    %v451 = vmul.f32 %v450, %v27
    %v452 = vmul.f32 %v450, %v28
    %v453 = vadd.f32 %v447, %v451
    %v454 = vadd.f32 %v448, %v452
    %s455 = sld [smem:[#allocation2 + $0x282]]
    %v456 = vstv %s455
    %v457 = vmul.f32 %v456, %v24
    %v458 = vmul.f32 %v456, %v25
    %461 = vrot.lane.b32.xlu0 %v457, 127
    %v462 = vpop.permute.xlu0 %461
    %463 = vrot.lane.b32.xlu0 %v458, 127
    %v464 = vpop.permute.xlu0 %463
    %v467 = vadd.f32 %v453, %v462
    %v468 = vadd.f32 %v454, %v464
    %s469 = sld [smem:[#allocation2 + $0x283]]
    %v470 = vstv %s469
    %v471 = vmul.f32 %v470, %v30
    %v472 = vmul.f32 %v470, %v31
    %v473 = vadd.f32 %v467, %v471
    %v474 = vadd.f32 %v468, %v472
    %s475 = sld [smem:[#allocation2 + $0x284]]
    %v476 = vstv %s475
    %v477 = vmul.f32 %v476, %v33
    %v478 = vmul.f32 %v476, %v34
    %v479 = vadd.f32 %v473, %v477
    %v480 = vadd.f32 %v474, %v478
    %s481 = sld [smem:[#allocation2 + $0x285]]
    %v482 = vstv %s481
    %v483 = vmul.f32 %v482, %v30
    %v484 = vmul.f32 %v482, %v31
    %487 = vrot.lane.b32.xlu0 %v483, 127
    %v488 = vpop.permute.xlu0 %487
    %489 = vrot.lane.b32.xlu0 %v484, 127
    %v490 = vpop.permute.xlu0 %489
    %v493 = vadd.f32 %v479, %v488
    %v494 = vadd.f32 %v480, %v490
    %s495 = sld [smem:[#allocation2 + $0x286]]
    %v496 = vstv %s495
    %v497 = vmul.f32 %v496, %v35
    %v498 = vmul.f32 %v496, %v36
    %v499 = vadd.f32 %v493, %v497
    %v500 = vadd.f32 %v494, %v498
    %s501 = sld [smem:[#allocation2 + $0x287]]
    %v502 = vstv %s501
    %v503 = vmul.f32 %v502, %v37
    %v504 = vmul.f32 %v502, %v38
    %v505 = vadd.f32 %v499, %v503
    %v506 = vadd.f32 %v500, %v504
    %s507 = sld [smem:[#allocation2 + $0x288]]
    %v508 = vstv %s507
    %v509 = vmul.f32 %v508, %v35
    %v510 = vmul.f32 %v508, %v36
    %513 = vrot.lane.b32.xlu0 %v509, 127
    %v514 = vpop.permute.xlu0 %513
    %515 = vrot.lane.b32.xlu0 %v510, 127
    %v516 = vpop.permute.xlu0 %515
    %v519 = vadd.f32 %v505, %v514
    %v520 = vadd.f32 %v506, %v516
    %v521 = vtanh.pop %v519
    %v522 = vtanh.pop %v520
    %s523 = scalar_lea.vmem %s2, 80
    %524 = vst.msk [vmem:[%s523] sm:$0xff] %vm117, %v521
    %525 = vst.msk [vmem:[%s523 + $0x8] sm:$0x3f] %vm119, %v522
    %s526 = sld [smem:[#allocation2 + $0x300]]
    %v527 = vstv %s526
    %v528 = vmul.f32 %v527, %v24
    %v529 = vmul.f32 %v527, %v25
    %s530 = sld [smem:[#allocation2 + $0x301]]
    %v531 = vstv %s530
    %v532 = vmul.f32 %v531, %v27
    %v533 = vmul.f32 %v531, %v28
    %v534 = vadd.f32 %v528, %v532
    %v535 = vadd.f32 %v529, %v533
    %s536 = sld [smem:[#allocation2 + $0x302]]
    %v537 = vstv %s536
    %v538 = vmul.f32 %v537, %v24
    %v539 = vmul.f32 %v537, %v25
    %542 = vrot.lane.b32.xlu0 %v538, 127
    %v543 = vpop.permute.xlu0 %542
    %544 = vrot.lane.b32.xlu0 %v539, 127
    %v545 = vpop.permute.xlu0 %544
    %v548 = vadd.f32 %v534, %v543
    %v549 = vadd.f32 %v535, %v545
    %s550 = sld [smem:[#allocation2 + $0x303]]
    %v551 = vstv %s550
    %v552 = vmul.f32 %v551, %v30
    %v553 = vmul.f32 %v551, %v31
    %v554 = vadd.f32 %v548, %v552
    %v555 = vadd.f32 %v549, %v553
    %s556 = sld [smem:[#allocation2 + $0x304]]
    %v557 = vstv %s556
    %v558 = vmul.f32 %v557, %v33
    %v559 = vmul.f32 %v557, %v34
    %v560 = vadd.f32 %v554, %v558
    %v561 = vadd.f32 %v555, %v559
    %s562 = sld [smem:[#allocation2 + $0x305]]
    %v563 = vstv %s562
    %v564 = vmul.f32 %v563, %v30
    %v565 = vmul.f32 %v563, %v31
    %568 = vrot.lane.b32.xlu0 %v564, 127
    %v569 = vpop.permute.xlu0 %568
    %570 = vrot.lane.b32.xlu0 %v565, 127
    %v571 = vpop.permute.xlu0 %570
    %v574 = vadd.f32 %v560, %v569
    %v575 = vadd.f32 %v561, %v571
    %s576 = sld [smem:[#allocation2 + $0x306]]
    %v577 = vstv %s576
    %v578 = vmul.f32 %v577, %v35
    %v579 = vmul.f32 %v577, %v36
    %v580 = vadd.f32 %v574, %v578
    %v581 = vadd.f32 %v575, %v579
    %s582 = sld [smem:[#allocation2 + $0x307]]
    %v583 = vstv %s582
    %v584 = vmul.f32 %v583, %v37
    %v585 = vmul.f32 %v583, %v38
    %v586 = vadd.f32 %v580, %v584
    %v587 = vadd.f32 %v581, %v585
    %s588 = sld [smem:[#allocation2 + $0x308]]
    %v589 = vstv %s588
    %v590 = vmul.f32 %v589, %v35
    %v591 = vmul.f32 %v589, %v36
    %594 = vrot.lane.b32.xlu0 %v590, 127
    %v595 = vpop.permute.xlu0 %594
    %596 = vrot.lane.b32.xlu0 %v591, 127
    %v597 = vpop.permute.xlu0 %596
    %v600 = vadd.f32 %v586, %v595
    %v601 = vadd.f32 %v587, %v597
    %v602 = vtanh.pop %v600
    %v603 = vtanh.pop %v601
    %s604 = scalar_lea.vmem %s2, 96
    %605 = vst.msk [vmem:[%s604] sm:$0xff] %vm117, %v602
    %606 = vst.msk [vmem:[%s604 + $0x8] sm:$0x3f] %vm119, %v603
    %s607 = sld [smem:[#allocation2 + $0x380]]
    %v608 = vstv %s607
    %v609 = vmul.f32 %v608, %v24
    %v610 = vmul.f32 %v608, %v25
    %s611 = sld [smem:[#allocation2 + $0x381]]
    %v612 = vstv %s611
    %v613 = vmul.f32 %v612, %v27
    %v614 = vmul.f32 %v612, %v28
    %v615 = vadd.f32 %v609, %v613
    %v616 = vadd.f32 %v610, %v614
    %s617 = sld [smem:[#allocation2 + $0x382]]
    %v618 = vstv %s617
    %v619 = vmul.f32 %v618, %v24
    %v620 = vmul.f32 %v618, %v25
    %623 = vrot.lane.b32.xlu0 %v619, 127
    %v624 = vpop.permute.xlu0 %623
    %625 = vrot.lane.b32.xlu0 %v620, 127
    %v626 = vpop.permute.xlu0 %625
    %v629 = vadd.f32 %v615, %v624
    %v630 = vadd.f32 %v616, %v626
    %s631 = sld [smem:[#allocation2 + $0x383]]
    %v632 = vstv %s631
    %v633 = vmul.f32 %v632, %v30
    %v634 = vmul.f32 %v632, %v31
    %v635 = vadd.f32 %v629, %v633
    %v636 = vadd.f32 %v630, %v634
    %s637 = sld [smem:[#allocation2 + $0x384]]
    %v638 = vstv %s637
    %v639 = vmul.f32 %v638, %v33
    %v640 = vmul.f32 %v638, %v34
    %v641 = vadd.f32 %v635, %v639
    %v642 = vadd.f32 %v636, %v640
    %s643 = sld [smem:[#allocation2 + $0x385]]
    %v644 = vstv %s643
    %v645 = vmul.f32 %v644, %v30
    %v646 = vmul.f32 %v644, %v31
    %649 = vrot.lane.b32.xlu0 %v645, 127
    %v650 = vpop.permute.xlu0 %649
    %651 = vrot.lane.b32.xlu0 %v646, 127
    %v652 = vpop.permute.xlu0 %651
    %v655 = vadd.f32 %v641, %v650
    %v656 = vadd.f32 %v642, %v652
    %s657 = sld [smem:[#allocation2 + $0x386]]
    %v658 = vstv %s657
    %v659 = vmul.f32 %v658, %v35
    %v660 = vmul.f32 %v658, %v36
    %v661 = vadd.f32 %v655, %v659
    %v662 = vadd.f32 %v656, %v660
    %s663 = sld [smem:[#allocation2 + $0x387]]
    %v664 = vstv %s663
    %v665 = vmul.f32 %v664, %v37
    %v666 = vmul.f32 %v664, %v38
    %v667 = vadd.f32 %v661, %v665
    %v668 = vadd.f32 %v662, %v666
    %s669 = sld [smem:[#allocation2 + $0x388]]
    %v670 = vstv %s669
    %v671 = vmul.f32 %v670, %v35
    %v672 = vmul.f32 %v670, %v36
    %675 = vrot.lane.b32.xlu0 %v671, 127
    %v676 = vpop.permute.xlu0 %675
    %677 = vrot.lane.b32.xlu0 %v672, 127
    %v678 = vpop.permute.xlu0 %677
    %v681 = vadd.f32 %v667, %v676
    %v682 = vadd.f32 %v668, %v678
    %v683 = vtanh.pop %v681
    %v684 = vtanh.pop %v682
    %s685 = scalar_lea.vmem %s2, 112
    %686 = vst.msk [vmem:[%s685] sm:$0xff] %vm117, %v683
    %687 = vst.msk [vmem:[%s685 + $0x8] sm:$0x3f] %vm119, %v684
    // Predicated region
    $region14: #{conv2d_tanh.1} parent=1 // pred_check
      _
    $region15: #{conv2d_tanh.1} parent=1 // pred_check_branch
      %689 = sbr.rel (0) target = $region17
    $region16: #{conv2d_tanh.1} parent=1 // pred_region
      _
    $region17: #{conv2d_tanh.1} parent=1 // pred_fallthru
      _
    // Predicated region
    $region18: #{conv2d_tanh.1} parent=1 // pred_check
      _
    $region19: #{conv2d_tanh.1} parent=1 // pred_check_branch
      %691 = sbr.rel (0) target = $region21
    $region20: #{conv2d_tanh.1} parent=1 // pred_region
      _
    $region21: #{conv2d_tanh.1} parent=1 // pred_fallthru
      _
    %692 = vsyncpa [#allocation3], 1

</llo_original>
